<compile_context>
chip_gen: v5e
topology: v5e:2x2
jax: 0.10.0
libtpu: 0.0.40
codegen_flags: <defaults>
</compile_context>

<pallas_src>
import functools

import jax
import jax.numpy as jnp
from jax.experimental import pallas as pl
from jax.experimental.pallas import tpu as pltpu


def _phase_tap(e, dy, p):
    """Output row 2h+e, kernel tap dy reads input row 2h+e+dy-p = 2*(h+o)+s.
    Returns (slab s: 0=even rows / 1=odd rows, row offset o)."""
    shift = e + dy - p
    s = shift % 2
    o = (shift - s) // 2
    return s, o


# ----------------------------------------------------------------------------
# Fused kernel: B images per grid step, channel-packed lanes (w*C + c),
# rows phase-separated into even/odd slabs (no unpool interleave needed).
# ----------------------------------------------------------------------------
def _fused_kernel(x_ref, code_ref, w1_ref, b1_ref, w2_ref, b2_ref, out_ref,
                  up_ref, mid_ref, *, B, H, K, p, P2, L0, L1, L2):
    # Keep the zero halo rows of the persistent scratch valid.  Only the halo is
    # zeroed (interior is fully overwritten below) -> tiny stores, and correct
    # even when the grid is sharded across TensorCores.
    if P2 > 0:
        up_ref[:, :, 0:P2, :] = jnp.zeros((2, B, P2, L0), jnp.bfloat16)
        up_ref[:, :, P2 + H:P2 + H + P2, :] = jnp.zeros((2, B, P2, L0), jnp.bfloat16)
        mid_ref[:, :, 0:P2, :] = jnp.zeros((2, B, P2, L1), jnp.bfloat16)
        mid_ref[:, :, P2 + H:P2 + H + P2, :] = jnp.zeros((2, B, P2, L1), jnp.bfloat16)

    # ---- MaxUnpool2d(2,2): 4-way select on host-precomputed phase code -------
    # Lane spread (w -> 2w+dx) is folded into w1 (row-permuted banded weight);
    # row spread (h -> 2h+dy) is handled by the even/odd slab layout.
    x = x_ref[...]          # (B, H, W*Cin)  f32
    code = code_ref[...]    # (B, H, W*Cin)  int32 in {0,1,2,3} = dy*2+dx
    sels = [jnp.where(code == k, x, 0.0) for k in range(4)]
    e_u = jnp.concatenate([sels[0], sels[1]], axis=-1).astype(jnp.bfloat16)
    o_u = jnp.concatenate([sels[2], sels[3]], axis=-1).astype(jnp.bfloat16)
    up_ref[0, :, P2:P2 + H, :] = e_u
    up_ref[1, :, P2:P2 + H, :] = o_u

    # ---- one conv block = single (2*B*H, K*L) @ (K*L, Lout) bf16 matmul ------
    def conv_block(src_ref, w_ref, b_ref, L):
        def rows(e):
            slices = []
            for dy in range(K):
                s, o = _phase_tap(e, dy, p)
                slices.append(src_ref[s, :, P2 + o:P2 + o + H, :])
            return jnp.concatenate(slices, axis=-1)            # (B, H, K*L) bf16
        patches = jnp.concatenate([rows(0), rows(1)], axis=0)   # (2B, H, K*L)
        patches = patches.reshape(2 * B * H, K * L)
        acc = jnp.dot(patches, w_ref[...], preferred_element_type=jnp.float32)
        return jnp.maximum(acc + b_ref[...], 0.0)               # (2BH, Lout) f32

    y1 = conv_block(up_ref, w1_ref, b1_ref, L0)                 # (2BH, Wout*Cmid)
    mid_ref[:, :, P2:P2 + H, :] = y1.astype(jnp.bfloat16).reshape(2, B, H, L1)
    y2 = conv_block(mid_ref, w2_ref, b2_ref, L1)                # (2BH, Wout*Cout)
    out_ref[...] = y2.reshape(2, B, H, L2).astype(out_ref.dtype)


# ----------------------------------------------------------------------------
# Host-side weight folding (pure jnp, done once per call, f32 then cast bf16)
# ----------------------------------------------------------------------------
def _banded_weight(dw, pw, gamma, beta, mean, var, Wout, K, eps=1e-5):
    """Depthwise taps + 1x1 pointwise + BN (eval mode) folded into a banded-in-W
    matrix per dy tap, stacked:  W[dy*Wout*Cin + wi*Cin + ci, wo*Cout + co]."""
    Cin, Cout = dw.shape[0], pw.shape[0]
    p = K // 2
    scale = gamma / jnp.sqrt(var + eps)
    shift = beta - mean * scale
    pwm = pw[:, :, 0, 0] * scale[:, None]                        # (Cout, Cin)
    eff = jnp.einsum("ikl,oi->klio", dw[:, 0], pwm)              # (K, K, Cin, Cout)
    wi = jnp.arange(Wout)
    dx = wi[:, None] - wi[None, :] + p                           # (Wout, Wout)
    valid = (dx >= 0) & (dx < K)
    Wb = eff[:, jnp.clip(dx, 0, K - 1)]                          # (K,Wout,Wout,Cin,Cout)
    Wb = jnp.where(valid[None, :, :, None, None], Wb, 0.0)
    Wb = Wb.transpose(0, 1, 3, 2, 4).reshape(K * Wout * Cin, Wout * Cout)
    return Wb, jnp.tile(shift, (Wout,))[None, :]                 # weight, bias row


def up_ds_conv2_forward(x_nchw, indices_nchw, output_size, params, *, K):
    # TODO(synk): BatchNorm is applied in eval mode (running stats folded into the
    # fused weights); training-mode batch statistics are not computed.
    # TODO(synk): indices are assumed to come from MaxPool2d(2, stride=2) so each
    # index lies inside its own 2x2 output window; a general plane-wide
    # MaxUnpool2d scatter is not expressed here.
    # TODO(synk): the banded weight is still O(Wout^2); for very large widths
    # switch to a per-pixel im2col weight or tile W with a halo (v7x VMEM).
    N, Cin, H, W = x_nchw.shape
    Hout, Wout = output_size[-2], output_size[-1]
    assert Hout == 2 * H and Wout == 2 * W
    assert K % 2 == 1, "odd kernel_size assumed"
    Cmid = params["pw1"].shape[0]
    Cout = params["pw2"].shape[0]
    p = K // 2
    taps = [_phase_tap(e, dy, p) for e in (0, 1) for dy in range(K)]
    P2 = max(abs(o) for _, o in taps)                    # slab halo rows
    L0, L1, L2 = Wout * Cin, Wout * Cmid, Wout * Cout

    # Batch images per grid step so the conv matmuls see M = B*Hout (target 256).
    B = 1
    for b in range(1, N + 1):
        if N % b == 0 and b * Hout <= 256:
            B = b
    # TODO(synk): on v7x prefer keeping N//B a multiple of 2 so the "parallel"
    # grid axis can shard across both TensorCores.

    # channel-packed inputs (lane = w*Cin + c)
    x_p = jnp.transpose(x_nchw, (0, 2, 3, 1)).reshape(N, H, W * Cin)
    h_i = jnp.arange(H)[None, None, :, None]
    w_i = jnp.arange(W)[None, None, None, :]
    base = 2 * h_i * Wout + 2 * w_i
    offw = indices_nchw.astype(jnp.int32) - base
    code = (offw // Wout) * 2 + (offw % Wout)            # in-window phase dy*2+dx
    code_p = jnp.transpose(code, (0, 2, 3, 1)).reshape(N, H, W * Cin)

    # fold conv + BN into banded weights in f32, then cast to bf16 for the MXU
    w1, b1 = _banded_weight(params["dw1"], params["pw1"], params["bn1_gamma"],
                            params["bn1_beta"], params["bn1_mean"],
                            params["bn1_var"], Wout, K)
    w2, b2 = _banded_weight(params["dw2"], params["pw2"], params["bn2_gamma"],
                            params["bn2_beta"], params["bn2_mean"],
                            params["bn2_var"], Wout, K)
    # layer-1 rows permuted to the pre-spread unpool lane order (dx, w, c)
    dxp = jnp.arange(2)[:, None, None]
    wv = jnp.arange(W)[None, :, None]
    cv = jnp.arange(Cin)[None, None, :]
    within = ((2 * wv + dxp) * Cin + cv).reshape(-1)
    perm = (jnp.arange(K)[:, None] * (Wout * Cin) + within[None, :]).reshape(-1)
    w1 = w1[perm].astype(jnp.bfloat16)
    w2 = w2.astype(jnp.bfloat16)

    kernel = functools.partial(_fused_kernel, B=B, H=H, K=K, p=p, P2=P2,
                               L0=L0, L1=L1, L2=L2)
    out_packed = pl.pallas_call(
        kernel,
        out_shape=jax.ShapeDtypeStruct((2, N, H, L2), x_nchw.dtype),
        grid=(N // B,),
        in_specs=[
            pl.BlockSpec((B, H, W * Cin), lambda n: (n, 0, 0)),      # x
            pl.BlockSpec((B, H, W * Cin), lambda n: (n, 0, 0)),      # phase code
            pl.BlockSpec((K * L0, L1), lambda n: (0, 0)),            # w1 (bf16)
            pl.BlockSpec((1, L1), lambda n: (0, 0)),                 # shift1 (f32)
            pl.BlockSpec((K * L1, L2), lambda n: (0, 0)),            # w2 (bf16)
            pl.BlockSpec((1, L2), lambda n: (0, 0)),                 # shift2 (f32)
        ],
        out_specs=pl.BlockSpec((2, B, H, L2), lambda n: (0, n, 0, 0)),
        scratch_shapes=[
            pltpu.VMEM((2, B, H + 2 * P2, L0), jnp.bfloat16),        # unpool slabs
            pltpu.VMEM((2, B, H + 2 * P2, L1), jnp.bfloat16),        # layer-1 slabs
        ],
        compiler_params=pltpu.CompilerParams(dimension_semantics=("parallel",)),
    )(x_p, code_p, w1, b1, w2, b2)

    # wrapper-side de-interleave of the even/odd row phases -> NCHW
    out = out_packed.reshape(2, N, H, Wout, Cout)
    out = jnp.transpose(out, (1, 4, 2, 0, 3)).reshape(N, Cout, Hout, Wout)
    return out


# ----------------------------------------------------------------------------
# Parameter setup + pure-JAX reference for correctness checking
# ----------------------------------------------------------------------------
def init_params(key, chin, chout, K):
    ks = jax.random.split(key, 12)
    return {
        "dw1": 0.3 * jax.random.normal(ks[0], (chin, 1, K, K), jnp.float32),
        "pw1": 0.3 * jax.random.normal(ks[1], (chin, chin, 1, 1), jnp.float32),
        "bn1_gamma": 1.0 + 0.1 * jax.random.normal(ks[2], (chin,), jnp.float32),
        "bn1_beta": 0.1 * jax.random.normal(ks[3], (chin,), jnp.float32),
        "bn1_mean": 0.1 * jax.random.normal(ks[4], (chin,), jnp.float32),
        "bn1_var": 0.9 + 0.1 * jnp.abs(jax.random.normal(ks[5], (chin,), jnp.float32)),
        "dw2": 0.3 * jax.random.normal(ks[6], (chin, 1, K, K), jnp.float32),
        "pw2": 0.3 * jax.random.normal(ks[7], (chout, chin, 1, 1), jnp.float32),
        "bn2_gamma": 1.0 + 0.1 * jax.random.normal(ks[8], (chout,), jnp.float32),
        "bn2_beta": 0.1 * jax.random.normal(ks[9], (chout,), jnp.float32),
        "bn2_mean": 0.1 * jax.random.normal(ks[10], (chout,), jnp.float32),
        "bn2_var": 0.9 + 0.1 * jnp.abs(jax.random.normal(ks[11], (chout,), jnp.float32)),
    }


def _ref_forward(x, idx, output_size, params, K):
    N, Cin, H, W = x.shape
    Hout, Wout = output_size[-2], output_size[-1]
    out = jnp.zeros((N, Cin, Hout * Wout), x.dtype)
    n_i = jnp.arange(N)[:, None, None]
    c_i = jnp.arange(Cin)[None, :, None]
    out = out.at[n_i, c_i, idx.reshape(N, Cin, -1)].set(x.reshape(N, Cin, -1))
    y = out.reshape(N, Cin, Hout, Wout)

    def block(y, dw, pw, gamma, beta, mean, var, groups):
        y = jax.lax.conv_general_dilated(
            y, dw, window_strides=(1, 1), padding=((K // 2, K // 2),) * 2,
            dimension_numbers=("NCHW", "OIHW", "NCHW"),
            feature_group_count=groups)
        y = jax.lax.conv_general_dilated(
            y, pw, window_strides=(1, 1), padding="VALID",
            dimension_numbers=("NCHW", "OIHW", "NCHW"))
        scale = gamma / jnp.sqrt(var + 1e-5)
        shift = beta - mean * scale
        y = y * scale[None, :, None, None] + shift[None, :, None, None]
        return jnp.maximum(y, 0.0)

    y = block(y, params["dw1"], params["pw1"], params["bn1_gamma"],
              params["bn1_beta"], params["bn1_mean"], params["bn1_var"], Cin)
    y = block(y, params["dw2"], params["pw2"], params["bn2_gamma"],
              params["bn2_beta"], params["bn2_mean"], params["bn2_var"], Cin)
    return y


if __name__ == "__main__":
    chin, chout, K = 4, 8, 3
    N, H, W = 2, 8, 8                       # pooled input -> unpooled 16x16
    Hout, Wout = 2 * H, 2 * W

    key = jax.random.PRNGKey(0)
    kx, ki, kp = jax.random.split(key, 3)
    params = init_params(kp, chin, chout, K)

    x = jax.random.normal(kx, (N, chin, H, W), jnp.float32)
    # Indices as produced by MaxPool2d(2, stride=2, return_indices=True):
    # each index points inside its own 2x2 window of the unpooled plane.
    r = jax.random.randint(ki, (N, chin, H, W, 2), 0, 2)
    h_i = jnp.arange(H)[None, None, :, None]
    w_i = jnp.arange(W)[None, None, None, :]
    indices = ((2 * h_i + r[..., 0]) * Wout + (2 * w_i + r[..., 1])).astype(jnp.int32)
    output_size = (N, chin, Hout, Wout)

    out = up_ds_conv2_forward(x, indices, output_size, params, K=K)
    out = jax.block_until_ready(out)

    ref = _ref_forward(x, indices, output_size, params, K)
    assert out.shape == (N, chout, Hout, Wout)
    err = float(jnp.max(jnp.abs(out - ref)))
    if err < 5e-2:                          # bf16 matmul operands, f32 accumulate
        print("KERNEL_OK")
    else:
        print("MISMATCH", err)
</pallas_src>

<mosaic_0001>
module attributes {stable_mosaic.version = 11 : i64} {
  func.func @_fused_kernel(%arg0: i32, %arg1: memref<2x8x32xf32, #tpu.memory_space<vmem>>, %arg2: memref<2x8x32xi32, #tpu.memory_space<vmem>>, %arg3: memref<192x64xbf16, #tpu.memory_space<vmem>>, %arg4: memref<1x64xf32, #tpu.memory_space<vmem>>, %arg5: memref<192x128xbf16, #tpu.memory_space<vmem>>, %arg6: memref<1x128xf32, #tpu.memory_space<vmem>>, %arg7: memref<2x2x8x128xf32, #tpu.memory_space<vmem>>, %arg8: memref<2x2x10x64xbf16, #tpu.memory_space<vmem>>, %arg9: memref<2x2x10x64xbf16, #tpu.memory_space<vmem>>) attributes {dimension_semantics = [#tpu.dimension_semantics<parallel>], iteration_bounds = array<i64: 1>, scalar_prefetch = 0 : i64, scratch_operands = 2 : i64, tpu.core_type = #tpu.core_type<tc>, window_params = [{transform_indices = @transform_0, window_bounds = array<i64: 2, 8, 32>}, {transform_indices = @transform_1, window_bounds = array<i64: 2, 8, 32>}, {pipeline_mode = #tpu.pipeline_mode<synchronous>, transform_indices = @transform_2, window_bounds = array<i64: 192, 64>}, {pipeline_mode = #tpu.pipeline_mode<synchronous>, transform_indices = @transform_3, window_bounds = array<i64: 1, 64>}, {pipeline_mode = #tpu.pipeline_mode<synchronous>, transform_indices = @transform_4, window_bounds = array<i64: 192, 128>}, {pipeline_mode = #tpu.pipeline_mode<synchronous>, transform_indices = @transform_5, window_bounds = array<i64: 1, 128>}, {transform_indices = @transform_6, window_bounds = array<i64: 2, 2, 8, 128>}]} {
    %cst = arith.constant 0.000000e+00 : bf16
    %0 = vector.broadcast %cst : bf16 to vector<2x2x1x64xbf16>
    %c0 = arith.constant 0 : index
    %c0_0 = arith.constant 0 : index
    %c0_1 = arith.constant 0 : index
    %c0_2 = arith.constant 0 : index
    %1 = vector.load %arg8[%c0, %c0_0, %c0_1, %c0_2] : memref<2x2x10x64xbf16, #tpu.memory_space<vmem>>, vector<2x2x1x64xbf16>
    tpu.vector_store %arg8[%c0, %c0_0, %c0_1, %c0_2], %0 {strides = array<i32>} : memref<2x2x10x64xbf16, #tpu.memory_space<vmem>>, vector<2x2x1x64xbf16>,
    %cst_3 = arith.constant 0.000000e+00 : bf16
    %2 = vector.broadcast %cst_3 : bf16 to vector<2x2x1x64xbf16>
    %c0_4 = arith.constant 0 : index
    %c0_5 = arith.constant 0 : index
    %c9 = arith.constant 9 : index
    %c0_6 = arith.constant 0 : index
    %3 = vector.load %arg8[%c0_4, %c0_5, %c9, %c0_6] : memref<2x2x10x64xbf16, #tpu.memory_space<vmem>>, vector<2x2x1x64xbf16>
    tpu.vector_store %arg8[%c0_4, %c0_5, %c9, %c0_6], %2 {strides = array<i32>} : memref<2x2x10x64xbf16, #tpu.memory_space<vmem>>, vector<2x2x1x64xbf16>,
    %cst_7 = arith.constant 0.000000e+00 : bf16
    %4 = vector.broadcast %cst_7 : bf16 to vector<2x2x1x64xbf16>
    %c0_8 = arith.constant 0 : index
    %c0_9 = arith.constant 0 : index
    %c0_10 = arith.constant 0 : index
    %c0_11 = arith.constant 0 : index
    %5 = vector.load %arg9[%c0_8, %c0_9, %c0_10, %c0_11] : memref<2x2x10x64xbf16, #tpu.memory_space<vmem>>, vector<2x2x1x64xbf16>
    tpu.vector_store %arg9[%c0_8, %c0_9, %c0_10, %c0_11], %4 {strides = array<i32>} : memref<2x2x10x64xbf16, #tpu.memory_space<vmem>>, vector<2x2x1x64xbf16>,
    %cst_12 = arith.constant 0.000000e+00 : bf16
    %6 = vector.broadcast %cst_12 : bf16 to vector<2x2x1x64xbf16>
    %c0_13 = arith.constant 0 : index
    %c0_14 = arith.constant 0 : index
    %c9_15 = arith.constant 9 : index
    %c0_16 = arith.constant 0 : index
    %7 = vector.load %arg9[%c0_13, %c0_14, %c9_15, %c0_16] : memref<2x2x10x64xbf16, #tpu.memory_space<vmem>>, vector<2x2x1x64xbf16>
    tpu.vector_store %arg9[%c0_13, %c0_14, %c9_15, %c0_16], %6 {strides = array<i32>} : memref<2x2x10x64xbf16, #tpu.memory_space<vmem>>, vector<2x2x1x64xbf16>,
    %c0_17 = arith.constant 0 : index
    %c0_18 = arith.constant 0 : index
    %c0_19 = arith.constant 0 : index
    %8 = vector.load %arg1[%c0_17, %c0_18, %c0_19] : memref<2x8x32xf32, #tpu.memory_space<vmem>>, vector<2x8x32xf32>
    %c0_20 = arith.constant 0 : index
    %c0_21 = arith.constant 0 : index
    %c0_22 = arith.constant 0 : index
    %9 = vector.load %arg2[%c0_20, %c0_21, %c0_22] : memref<2x8x32xi32, #tpu.memory_space<vmem>>, vector<2x8x32xi32>
    %c0_i32 = arith.constant 0 : i32
    %10 = vector.broadcast %c0_i32 : i32 to vector<2x8x32xi32>
    %11 = arith.cmpi eq, %9, %10 : vector<2x8x32xi32>
    %cst_23 = arith.constant 0.000000e+00 : f32
    %12 = vector.broadcast %cst_23 : f32 to vector<2x8x32xf32>
    %13 = arith.select %11, %8, %12 : vector<2x8x32xi1>, vector<2x8x32xf32>
    %c1_i32 = arith.constant 1 : i32
    %14 = vector.broadcast %c1_i32 : i32 to vector<2x8x32xi32>
    %15 = arith.cmpi eq, %9, %14 : vector<2x8x32xi32>
    %cst_24 = arith.constant 0.000000e+00 : f32
    %16 = vector.broadcast %cst_24 : f32 to vector<2x8x32xf32>
    %17 = arith.select %15, %8, %16 : vector<2x8x32xi1>, vector<2x8x32xf32>
    %c2_i32 = arith.constant 2 : i32
    %18 = vector.broadcast %c2_i32 : i32 to vector<2x8x32xi32>
    %19 = arith.cmpi eq, %9, %18 : vector<2x8x32xi32>
    %cst_25 = arith.constant 0.000000e+00 : f32
    %20 = vector.broadcast %cst_25 : f32 to vector<2x8x32xf32>
    %21 = arith.select %19, %8, %20 : vector<2x8x32xi1>, vector<2x8x32xf32>
    %c3_i32 = arith.constant 3 : i32
    %22 = vector.broadcast %c3_i32 : i32 to vector<2x8x32xi32>
    %23 = arith.cmpi eq, %9, %22 : vector<2x8x32xi32>
    %cst_26 = arith.constant 0.000000e+00 : f32
    %24 = vector.broadcast %cst_26 : f32 to vector<2x8x32xf32>
    %25 = arith.select %23, %8, %24 : vector<2x8x32xi1>, vector<2x8x32xf32>
    %26 = tpu.concatenate %13, %17 in 2 : vector<2x8x32xf32>, vector<2x8x32xf32> -> vector<2x8x64xf32>
    %27 = arith.truncf %26 : vector<2x8x64xf32> to vector<2x8x64xbf16>
    %28 = tpu.concatenate %21, %25 in 2 : vector<2x8x32xf32>, vector<2x8x32xf32> -> vector<2x8x64xf32>
    %29 = arith.truncf %28 : vector<2x8x64xf32> to vector<2x8x64xbf16>
    %c0_27 = arith.constant 0 : index
    %c0_28 = arith.constant 0 : index
    %c1 = arith.constant 1 : index
    %c0_29 = arith.constant 0 : index
    %30 = vector.load %arg8[%c0_27, %c0_28, %c1, %c0_29] : memref<2x2x10x64xbf16, #tpu.memory_space<vmem>>, vector<1x2x8x64xbf16>
    %31 = vector.shape_cast %30 : vector<1x2x8x64xbf16> to vector<2x8x64xbf16>
    %32 = vector.shape_cast %27 : vector<2x8x64xbf16> to vector<1x2x8x64xbf16>
    tpu.vector_store %arg8[%c0_27, %c0_28, %c1, %c0_29], %32 {strides = array<i32>} : memref<2x2x10x64xbf16, #tpu.memory_space<vmem>>, vector<1x2x8x64xbf16>,
    %c1_30 = arith.constant 1 : index
    %c0_31 = arith.constant 0 : index
    %c1_32 = arith.constant 1 : index
    %c0_33 = arith.constant 0 : index
    %33 = vector.load %arg8[%c1_30, %c0_31, %c1_32, %c0_33] : memref<2x2x10x64xbf16, #tpu.memory_space<vmem>>, vector<1x2x8x64xbf16>
    %34 = vector.shape_cast %33 : vector<1x2x8x64xbf16> to vector<2x8x64xbf16>
    %35 = vector.shape_cast %29 : vector<2x8x64xbf16> to vector<1x2x8x64xbf16>
    tpu.vector_store %arg8[%c1_30, %c0_31, %c1_32, %c0_33], %35 {strides = array<i32>} : memref<2x2x10x64xbf16, #tpu.memory_space<vmem>>, vector<1x2x8x64xbf16>,
    %c1_34 = arith.constant 1 : index
    %c0_35 = arith.constant 0 : index
    %c0_36 = arith.constant 0 : index
    %c0_37 = arith.constant 0 : index
    %36 = vector.load %arg8[%c1_34, %c0_35, %c0_36, %c0_37] : memref<2x2x10x64xbf16, #tpu.memory_space<vmem>>, vector<1x2x8x64xbf16>
    %37 = vector.shape_cast %36 : vector<1x2x8x64xbf16> to vector<2x8x64xbf16>
    %c0_38 = arith.constant 0 : index
    %c0_39 = arith.constant 0 : index
    %c1_40 = arith.constant 1 : index
    %c0_41 = arith.constant 0 : index
    %38 = vector.load %arg8[%c0_38, %c0_39, %c1_40, %c0_41] : memref<2x2x10x64xbf16, #tpu.memory_space<vmem>>, vector<1x2x8x64xbf16>
    %39 = vector.shape_cast %38 : vector<1x2x8x64xbf16> to vector<2x8x64xbf16>
    %c1_42 = arith.constant 1 : index
    %c0_43 = arith.constant 0 : index
    %c1_44 = arith.constant 1 : index
    %c0_45 = arith.constant 0 : index
    %40 = vector.load %arg8[%c1_42, %c0_43, %c1_44, %c0_45] : memref<2x2x10x64xbf16, #tpu.memory_space<vmem>>, vector<1x2x8x64xbf16>
    %41 = vector.shape_cast %40 : vector<1x2x8x64xbf16> to vector<2x8x64xbf16>
    %42 = tpu.concatenate %37, %39, %41 in 2 : vector<2x8x64xbf16>, vector<2x8x64xbf16>, vector<2x8x64xbf16> -> vector<2x8x192xbf16>
    %c0_46 = arith.constant 0 : index
    %c0_47 = arith.constant 0 : index
    %c1_48 = arith.constant 1 : index
    %c0_49 = arith.constant 0 : index
    %43 = vector.load %arg8[%c0_46, %c0_47, %c1_48, %c0_49] : memref<2x2x10x64xbf16, #tpu.memory_space<vmem>>, vector<1x2x8x64xbf16>
    %44 = vector.shape_cast %43 : vector<1x2x8x64xbf16> to vector<2x8x64xbf16>
    %c1_50 = arith.constant 1 : index
    %c0_51 = arith.constant 0 : index
    %c1_52 = arith.constant 1 : index
    %c0_53 = arith.constant 0 : index
    %45 = vector.load %arg8[%c1_50, %c0_51, %c1_52, %c0_53] : memref<2x2x10x64xbf16, #tpu.memory_space<vmem>>, vector<1x2x8x64xbf16>
    %46 = vector.shape_cast %45 : vector<1x2x8x64xbf16> to vector<2x8x64xbf16>
    %c0_54 = arith.constant 0 : index
    %c0_55 = arith.constant 0 : index
    %c2 = arith.constant 2 : index
    %c0_56 = arith.constant 0 : index
    %47 = vector.load %arg8[%c0_54, %c0_55, %c2, %c0_56] : memref<2x2x10x64xbf16, #tpu.memory_space<vmem>>, vector<1x2x8x64xbf16>
    %48 = vector.shape_cast %47 : vector<1x2x8x64xbf16> to vector<2x8x64xbf16>
    %49 = tpu.concatenate %44, %46, %48 in 2 : vector<2x8x64xbf16>, vector<2x8x64xbf16>, vector<2x8x64xbf16> -> vector<2x8x192xbf16>
    %50 = tpu.concatenate %42, %49 in 0 : vector<2x8x192xbf16>, vector<2x8x192xbf16> -> vector<4x8x192xbf16>
    %51 = vector.shape_cast %50 : vector<4x8x192xbf16> to vector<32x192xbf16>
    %c0_57 = arith.constant 0 : index
    %c0_58 = arith.constant 0 : index
    %52 = vector.load %arg3[%c0_57, %c0_58] : memref<192x64xbf16, #tpu.memory_space<vmem>>, vector<192x64xbf16>
    %cst_59 = arith.constant dense<0.000000e+00> : vector<32x64xf32>
    %53 = tpu.matmul %51, %52, %cst_59 {dimension_numbers = #tpu.dot_dimension_numbers<[1], [0], [0], [1], [0, 0, 1, 1], [], []>} : vector<32x192xbf16>, vector<192x64xbf16>, vector<32x64xf32> -> vector<32x64xf32>
    %c0_60 = arith.constant 0 : index
    %c0_61 = arith.constant 0 : index
    %54 = vector.load %arg4[%c0_60, %c0_61] : memref<1x64xf32, #tpu.memory_space<vmem>>, vector<1x64xf32>
    %55 = vector.broadcast %54 : vector<1x64xf32> to vector<32x64xf32>
    %56 = arith.addf %53, %55 : vector<32x64xf32>
    %cst_62 = arith.constant 0.000000e+00 : f32
    %57 = vector.broadcast %cst_62 : f32 to vector<32x64xf32>
    %58 = arith.maximumf %56, %57 : vector<32x64xf32>
    %59 = arith.truncf %58 : vector<32x64xf32> to vector<32x64xbf16>
    %60 = vector.shape_cast %59 : vector<32x64xbf16> to vector<2x2x8x64xbf16>
    %c0_63 = arith.constant 0 : index
    %c0_64 = arith.constant 0 : index
    %c1_65 = arith.constant 1 : index
    %c0_66 = arith.constant 0 : index
    %61 = vector.load %arg9[%c0_63, %c0_64, %c1_65, %c0_66] : memref<2x2x10x64xbf16, #tpu.memory_space<vmem>>, vector<2x2x8x64xbf16>
    tpu.vector_store %arg9[%c0_63, %c0_64, %c1_65, %c0_66], %60 {strides = array<i32>} : memref<2x2x10x64xbf16, #tpu.memory_space<vmem>>, vector<2x2x8x64xbf16>,
    %c1_67 = arith.constant 1 : index
    %c0_68 = arith.constant 0 : index
    %c0_69 = arith.constant 0 : index
    %c0_70 = arith.constant 0 : index
    %62 = vector.load %arg9[%c1_67, %c0_68, %c0_69, %c0_70] : memref<2x2x10x64xbf16, #tpu.memory_space<vmem>>, vector<1x2x8x64xbf16>
    %63 = vector.shape_cast %62 : vector<1x2x8x64xbf16> to vector<2x8x64xbf16>
    %c0_71 = arith.constant 0 : index
    %c0_72 = arith.constant 0 : index
    %c1_73 = arith.constant 1 : index
    %c0_74 = arith.constant 0 : index
    %64 = vector.load %arg9[%c0_71, %c0_72, %c1_73, %c0_74] : memref<2x2x10x64xbf16, #tpu.memory_space<vmem>>, vector<1x2x8x64xbf16>
    %65 = vector.shape_cast %64 : vector<1x2x8x64xbf16> to vector<2x8x64xbf16>
    %c1_75 = arith.constant 1 : index
    %c0_76 = arith.constant 0 : index
    %c1_77 = arith.constant 1 : index
    %c0_78 = arith.constant 0 : index
    %66 = vector.load %arg9[%c1_75, %c0_76, %c1_77, %c0_78] : memref<2x2x10x64xbf16, #tpu.memory_space<vmem>>, vector<1x2x8x64xbf16>
    %67 = vector.shape_cast %66 : vector<1x2x8x64xbf16> to vector<2x8x64xbf16>
    %68 = tpu.concatenate %63, %65, %67 in 2 : vector<2x8x64xbf16>, vector<2x8x64xbf16>, vector<2x8x64xbf16> -> vector<2x8x192xbf16>
    %c0_79 = arith.constant 0 : index
    %c0_80 = arith.constant 0 : index
    %c1_81 = arith.constant 1 : index
    %c0_82 = arith.constant 0 : index
    %69 = vector.load %arg9[%c0_79, %c0_80, %c1_81, %c0_82] : memref<2x2x10x64xbf16, #tpu.memory_space<vmem>>, vector<1x2x8x64xbf16>
    %70 = vector.shape_cast %69 : vector<1x2x8x64xbf16> to vector<2x8x64xbf16>
    %c1_83 = arith.constant 1 : index
    %c0_84 = arith.constant 0 : index
    %c1_85 = arith.constant 1 : index
    %c0_86 = arith.constant 0 : index
    %71 = vector.load %arg9[%c1_83, %c0_84, %c1_85, %c0_86] : memref<2x2x10x64xbf16, #tpu.memory_space<vmem>>, vector<1x2x8x64xbf16>
    %72 = vector.shape_cast %71 : vector<1x2x8x64xbf16> to vector<2x8x64xbf16>
    %c0_87 = arith.constant 0 : index
    %c0_88 = arith.constant 0 : index
    %c2_89 = arith.constant 2 : index
    %c0_90 = arith.constant 0 : index
    %73 = vector.load %arg9[%c0_87, %c0_88, %c2_89, %c0_90] : memref<2x2x10x64xbf16, #tpu.memory_space<vmem>>, vector<1x2x8x64xbf16>
    %74 = vector.shape_cast %73 : vector<1x2x8x64xbf16> to vector<2x8x64xbf16>
    %75 = tpu.concatenate %70, %72, %74 in 2 : vector<2x8x64xbf16>, vector<2x8x64xbf16>, vector<2x8x64xbf16> -> vector<2x8x192xbf16>
    %76 = tpu.concatenate %68, %75 in 0 : vector<2x8x192xbf16>, vector<2x8x192xbf16> -> vector<4x8x192xbf16>
    %77 = vector.shape_cast %76 : vector<4x8x192xbf16> to vector<32x192xbf16>
    %c0_91 = arith.constant 0 : index
    %c0_92 = arith.constant 0 : index
    %78 = vector.load %arg5[%c0_91, %c0_92] : memref<192x128xbf16, #tpu.memory_space<vmem>>, vector<192x128xbf16>
    %cst_93 = arith.constant dense<0.000000e+00> : vector<32x128xf32>
    %79 = tpu.matmul %77, %78, %cst_93 {dimension_numbers = #tpu.dot_dimension_numbers<[1], [0], [0], [1], [0, 0, 1, 1], [], []>} : vector<32x192xbf16>, vector<192x128xbf16>, vector<32x128xf32> -> vector<32x128xf32>
    %c0_94 = arith.constant 0 : index
    %c0_95 = arith.constant 0 : index
    %80 = vector.load %arg6[%c0_94, %c0_95] : memref<1x128xf32, #tpu.memory_space<vmem>>, vector<1x128xf32>
    %81 = vector.broadcast %80 : vector<1x128xf32> to vector<32x128xf32>
    %82 = arith.addf %79, %81 : vector<32x128xf32>
    %cst_96 = arith.constant 0.000000e+00 : f32
    %83 = vector.broadcast %cst_96 : f32 to vector<32x128xf32>
    %84 = arith.maximumf %82, %83 : vector<32x128xf32>
    %85 = vector.shape_cast %84 : vector<32x128xf32> to vector<2x2x8x128xf32>
    %c0_97 = arith.constant 0 : index
    %c0_98 = arith.constant 0 : index
    %c0_99 = arith.constant 0 : index
    %c0_100 = arith.constant 0 : index
    %86 = vector.load %arg7[%c0_97, %c0_98, %c0_99, %c0_100] : memref<2x2x8x128xf32, #tpu.memory_space<vmem>>, vector<2x2x8x128xf32>
    tpu.vector_store %arg7[%c0_97, %c0_98, %c0_99, %c0_100], %85 {strides = array<i32>} : memref<2x2x8x128xf32, #tpu.memory_space<vmem>>, vector<2x2x8x128xf32>,
    return
  }
  func.func @transform_0(%arg0: i32) -> (i32, i32, i32) {
    %c0_i32 = arith.constant 0 : i32
    %c0_i32_0 = arith.constant 0 : i32
    %c0_i32_1 = arith.constant 0 : i32
    return %arg0, %c0_i32, %c0_i32_0 : i32, i32, i32
  }
  func.func @transform_1(%arg0: i32) -> (i32, i32, i32) {
    %c0_i32 = arith.constant 0 : i32
    %c0_i32_0 = arith.constant 0 : i32
    %c0_i32_1 = arith.constant 0 : i32
    return %arg0, %c0_i32, %c0_i32_0 : i32, i32, i32
  }
  func.func @transform_2(%arg0: i32) -> (i32, i32) {
    %c0_i32 = arith.constant 0 : i32
    %c0_i32_0 = arith.constant 0 : i32
    %c0_i32_1 = arith.constant 0 : i32
    return %c0_i32, %c0_i32_0 : i32, i32
  }
  func.func @transform_3(%arg0: i32) -> (i32, i32) {
    %c0_i32 = arith.constant 0 : i32
    %c0_i32_0 = arith.constant 0 : i32
    %c0_i32_1 = arith.constant 0 : i32
    return %c0_i32, %c0_i32_0 : i32, i32
  }
  func.func @transform_4(%arg0: i32) -> (i32, i32) {
    %c0_i32 = arith.constant 0 : i32
    %c0_i32_0 = arith.constant 0 : i32
    %c0_i32_1 = arith.constant 0 : i32
    return %c0_i32, %c0_i32_0 : i32, i32
  }
  func.func @transform_5(%arg0: i32) -> (i32, i32) {
    %c0_i32 = arith.constant 0 : i32
    %c0_i32_0 = arith.constant 0 : i32
    %c0_i32_1 = arith.constant 0 : i32
    return %c0_i32, %c0_i32_0 : i32, i32
  }
  func.func @transform_6(%arg0: i32) -> (i32, i32, i32, i32) {
    %c0_i32 = arith.constant 0 : i32
    %c0_i32_0 = arith.constant 0 : i32
    %c0_i32_1 = arith.constant 0 : i32
    %c0_i32_2 = arith.constant 0 : i32
    return %c0_i32, %arg0, %c0_i32_0, %c0_i32_1 : i32, i32, i32, i32
  }
}

</mosaic_0001>

<llo_original>
// kernel: tpu_custom_call.1
$region0: #{tpu_custom_call.1}
  #allocation0 [shape = 'u32[]', space=smem, size = 0x4, offset = 0x4, fixed_abs, tag = 'smem constant byte address 0x4 - core index']
  #allocation1 [shape = 'u32[72,128]{1,0:T(1,128)}', space=vmem, size = 0x9000, scoped, tag = 'internal scratch']
  #allocation2 [shape = 'bf16[2,2,10,64]{3,2,1,0:T(8,128)(2,1)}', space=vmem, size = 0x4000, scoped, tag = 'scratch operand']
  #allocation3 [shape = 'bf16[2,2,10,64]{3,2,1,0:T(8,128)(2,1)}', space=vmem, size = 0x4000, scoped, tag = 'scratch operand']
  %s0 = inlined_call_operand.vmem [shape: f32[2,8,32], index: 0, kind: input, shape index: {}]
  %s1 = inlined_call_operand.vmem [shape: s32[2,8,32], index: 1, kind: input, shape index: {}]
  %s2 = inlined_call_operand.vmem [shape: bf16[192,64], index: 2, kind: input, shape index: {}]
  %s3 = inlined_call_operand.vmem [shape: f32[1,64], index: 3, kind: input, shape index: {}]
  %s4 = inlined_call_operand.vmem [shape: bf16[192,128], index: 4, kind: input, shape index: {}]
  %s5 = inlined_call_operand.vmem [shape: f32[1,128], index: 5, kind: input, shape index: {}]
  %s6 = inlined_call_operand.hbm [shape: f32[2,2,8,128], index: 6, kind: output, shape index: {}]
  %s7 = sld [smem:[#allocation0]]
  $region34: #{tpu_custom_call.1} parent=0
    _
  %s9 = ssub.s32 1, %s7
  %s10 = scalar_select 0, %s9, %s7
  $region1: #{tpu_custom_call.1} parent=0
    #allocation4 [shape = 'u8[16384]{0}', space=vmem, size = 0x4000, scoped, tag = 'output window, operand 0, single buffered']
    #allocation5 [shape = 's32[1]{0}', space=sflag, size = 0x4, scoped, tag = 'scoped memory for tpu_custom_call.1']
    %11 = vsyncpa [#allocation5], 0
    // Predicated region
    $region2: #{tpu_custom_call.1} parent=1 // pred_check
      _
    $region3: #{tpu_custom_call.1} parent=1 // pred_check_branch
      %13 = sbr.rel (0) target = $region5
    $region4: #{tpu_custom_call.1} parent=1 // pred_region
      _
    $region5: #{tpu_custom_call.1} parent=1 // pred_fallthru
      _
    // Predicated region
    $region6: #{tpu_custom_call.1} parent=1 // pred_check
      _
    $region7: #{tpu_custom_call.1} parent=1 // pred_check_branch
      %15 = sbr.rel (0) target = $region9
    $region8: #{tpu_custom_call.1} parent=1 // pred_region
      _
    $region9: #{tpu_custom_call.1} parent=1 // pred_fallthru
      _
    // Predicated region
    $region10: #{tpu_custom_call.1} parent=1 // pred_check
      _
    $region11: #{tpu_custom_call.1} parent=1 // pred_check_branch
      %17 = sbr.rel (0) target = $region13
    $region12: #{tpu_custom_call.1} parent=1 // pred_region
      _
    $region13: #{tpu_custom_call.1} parent=1 // pred_fallthru
      _
    // Predicated region
    $region14: #{tpu_custom_call.1} parent=1 // pred_check
      _
    $region15: #{tpu_custom_call.1} parent=1 // pred_check_branch
      %19 = sbr.rel (0) target = $region17
    $region16: #{tpu_custom_call.1} parent=1 // pred_region
      _
    $region17: #{tpu_custom_call.1} parent=1 // pred_fallthru
      _
    // Predicated region
    $region18: #{tpu_custom_call.1} parent=1 // pred_check
      _
    $region19: #{tpu_custom_call.1} parent=1 // pred_check_branch
      %21 = sbr.rel (0) target = $region21
    $region20: #{tpu_custom_call.1} parent=1 // pred_region
      _
    $region21: #{tpu_custom_call.1} parent=1 // pred_fallthru
      _
    // Predicated region
    $region22: #{tpu_custom_call.1} parent=1 // pred_check
      _
    $region23: #{tpu_custom_call.1} parent=1 // pred_check_branch
      %23 = sbr.rel (0) target = $region25
    $region24: #{tpu_custom_call.1} parent=1 // pred_region
      _
    $region25: #{tpu_custom_call.1} parent=1 // pred_fallthru
      _
    %vm25 = vcmask 516096
    %vm26 = vsmask.f32 256
    %vm27 = vmand %vm25, %vm26
    %v28 = vld [vmem:[#allocation2] sm:$0x1]
    %v29 = vsel %vm27, 0, %v28
    %30 = vst [vmem:[#allocation2] sm:$0x1] %v29
    %v31 = vld [vmem:[#allocation2 + $0x8] sm:$0x1]
    %v32 = vsel %vm27, 0, %v31
    %33 = vst [vmem:[#allocation2 + $0x8] sm:$0x1] %v32
    %v34 = vld [vmem:[#allocation2 + $0x10] sm:$0x1]
    %v35 = vsel %vm27, 0, %v34
    %36 = vst [vmem:[#allocation2 + $0x10] sm:$0x1] %v35
    %v37 = vld [vmem:[#allocation2 + $0x18] sm:$0x1]
    %v38 = vsel %vm27, 0, %v37
    %39 = vst [vmem:[#allocation2 + $0x18] sm:$0x1] %v38
    %vm40 = vsmask.f32 7938
    %vm41 = vmand %vm25, %vm40
    %v42 = vld [vmem:[#allocation2 + $0x4] sm:$0x1]
    %v43 = vsel %vm41, 0, %v42
    %44 = vst [vmem:[#allocation2 + $0x4] sm:$0x1] %v43
    %v45 = vld [vmem:[#allocation2 + $0xc] sm:$0x1]
    %v46 = vsel %vm41, 0, %v45
    %47 = vst [vmem:[#allocation2 + $0xc] sm:$0x1] %v46
    %v48 = vld [vmem:[#allocation2 + $0x14] sm:$0x1]
    %v49 = vsel %vm41, 0, %v48
    %50 = vst [vmem:[#allocation2 + $0x14] sm:$0x1] %v49
    %v51 = vld [vmem:[#allocation2 + $0x1c] sm:$0x1]
    %v52 = vsel %vm41, 0, %v51
    %53 = vst [vmem:[#allocation2 + $0x1c] sm:$0x1] %v52
    %v54 = vld [vmem:[#allocation3] sm:$0x1]
    %v55 = vsel %vm27, 0, %v54
    %56 = vst [vmem:[#allocation3] sm:$0x1] %v55
    %v57 = vld [vmem:[#allocation3 + $0x8] sm:$0x1]
    %v58 = vsel %vm27, 0, %v57
    %59 = vst [vmem:[#allocation3 + $0x8] sm:$0x1] %v58
    %v60 = vld [vmem:[#allocation3 + $0x10] sm:$0x1]
    %v61 = vsel %vm27, 0, %v60
    %62 = vst [vmem:[#allocation3 + $0x10] sm:$0x1] %v61
    %v63 = vld [vmem:[#allocation3 + $0x18] sm:$0x1]
    %v64 = vsel %vm27, 0, %v63
    %65 = vst [vmem:[#allocation3 + $0x18] sm:$0x1] %v64
    %v66 = vld [vmem:[#allocation3 + $0x4] sm:$0x1]
    %v67 = vsel %vm41, 0, %v66
    %68 = vst [vmem:[#allocation3 + $0x4] sm:$0x1] %v67
    %v69 = vld [vmem:[#allocation3 + $0xc] sm:$0x1]
    %v70 = vsel %vm41, 0, %v69
    %71 = vst [vmem:[#allocation3 + $0xc] sm:$0x1] %v70
    %v72 = vld [vmem:[#allocation3 + $0x14] sm:$0x1]
    %v73 = vsel %vm41, 0, %v72
    %74 = vst [vmem:[#allocation3 + $0x14] sm:$0x1] %v73
    %v75 = vld [vmem:[#allocation3 + $0x1c] sm:$0x1]
    %v76 = vsel %vm41, 0, %v75
    %77 = vst [vmem:[#allocation3 + $0x1c] sm:$0x1] %v76
    %v78 = vld [vmem:[%s0] sm:$0xff]
    %v79 = vld [vmem:[%s0 + $0x8] sm:$0xff]
    %v80 = vld [vmem:[%s1] sm:$0xff]
    %v81 = vld [vmem:[%s1 + $0x8] sm:$0xff]
    %vm82 = vcmp.eq.s32.totalorder %v80, 0
    %vm83 = vcmp.eq.s32.totalorder %v81, 0
    %v84 = vsel %vm82, %v78, 0.0
    %v85 = vsel %vm83, %v79, 0.0
    %vm86 = vcmp.eq.s32.totalorder %v80, 1
    %vm87 = vcmp.eq.s32.totalorder %v81, 1
    %v88 = vsel %vm86, %v78, 0.0
    %v89 = vsel %vm87, %v79, 0.0
    %vm90 = vcmp.eq.s32.totalorder %v80, 2
    %vm91 = vcmp.eq.s32.totalorder %v81, 2
    %v92 = vsel %vm90, %v78, 0.0
    %v93 = vsel %vm91, %v79, 0.0
    %vm94 = vcmp.eq.s32.totalorder %v80, 3
    %vm95 = vcmp.eq.s32.totalorder %v81, 3
    %v96 = vsel %vm94, %v78, 0.0
    %v97 = vsel %vm95, %v79, 0.0
    %100 = vrot.lane.b32.xlu0 %v88, 32
    %v101 = vpop.permute.xlu0 %100
    %102 = vrot.lane.b32.xlu0 %v89, 32
    %v103 = vpop.permute.xlu0 %102
    %vm106 = vcmask 261120
    %v107 = vsel %vm106, %v84, %v101
    %v108 = vsel %vm106, %v85, %v103
    %v109 = vpack.c.bf16 %v107, %v107
    %v110 = vpack.c.bf16 %v108, %v108
    %113 = vrot.lane.b32.xlu0 %v96, 32
    %v114 = vpop.permute.xlu0 %113
    %115 = vrot.lane.b32.xlu0 %v97, 32
    %v116 = vpop.permute.xlu0 %115
    %v119 = vsel %vm106, %v92, %v114
    %v120 = vsel %vm106, %v93, %v116
    %v121 = vpack.c.bf16 %v119, %v119
    %v122 = vpack.c.bf16 %v120, %v120
    %v124 = vshrl.u32 %v109, 16
    %v126 = vrot.slane %v124, 7
    %v127 = vshll.u32 %v109, 16
    %v129 = vor.u32 %v126, %v127
    %v130 = vrot.slane %v126, 4
    %v132 = vshrl.u32 %v110, 16
    %v134 = vrot.slane %v132, 7
    %v135 = vshll.u32 %v110, 16
    %v137 = vor.u32 %v134, %v135
    %v138 = vrot.slane %v134, 4
    %vm143 = vcmask 519168
    %vm144 = vmand %vm143, %vm40
    %v145 = vld [vmem:[#allocation2] sm:$0xf]
    %v146 = vsel %vm144, %v129, %v145
    %147 = vst [vmem:[#allocation2] sm:$0xf] %v146
    %v148 = vld [vmem:[#allocation2 + $0x4] sm:$0x1]
    %v149 = vsel %vm27, %v130, %v148
    %150 = vst [vmem:[#allocation2 + $0x4] sm:$0x1] %v149
    %v151 = vld [vmem:[#allocation2 + $0x8] sm:$0xf]
    %v152 = vsel %vm144, %v137, %v151
    %153 = vst [vmem:[#allocation2 + $0x8] sm:$0xf] %v152
    %v154 = vld [vmem:[#allocation2 + $0xc] sm:$0x1]
    %v155 = vsel %vm27, %v138, %v154
    %156 = vst [vmem:[#allocation2 + $0xc] sm:$0x1] %v155
    %v158 = vshrl.u32 %v121, 16
    %v160 = vrot.slane %v158, 7
    %v161 = vshll.u32 %v121, 16
    %v163 = vor.u32 %v160, %v161
    %v164 = vrot.slane %v160, 4
    %v166 = vshrl.u32 %v122, 16
    %v168 = vrot.slane %v166, 7
    %v169 = vshll.u32 %v122, 16
    %v171 = vor.u32 %v168, %v169
    %v172 = vrot.slane %v168, 4
    %s177 = scalar_lea.vmem [#allocation2], 16
    %v178 = vld [vmem:[%s177] sm:$0xf]
    %v179 = vsel %vm144, %v163, %v178
    %180 = vst [vmem:[%s177] sm:$0xf] %v179
    %v181 = vld [vmem:[%s177 + $0x4] sm:$0x1]
    %v182 = vsel %vm27, %v164, %v181
    %183 = vst [vmem:[%s177 + $0x4] sm:$0x1] %v182
    %v184 = vld [vmem:[%s177 + $0x8] sm:$0xf]
    %v185 = vsel %vm144, %v171, %v184
    %186 = vst [vmem:[%s177 + $0x8] sm:$0xf] %v185
    %v187 = vld [vmem:[%s177 + $0xc] sm:$0x1]
    %v188 = vsel %vm27, %v172, %v187
    %189 = vst [vmem:[%s177 + $0xc] sm:$0x1] %v188
    %v190 = vld [vmem:[%s177] sm:$0xf]
    %v191 = vld [vmem:[%s177 + $0x8] sm:$0xf]
    %v192 = vld [vmem:[#allocation2] sm:$0xf]
    %v193 = vld [vmem:[#allocation2 + $0x4] sm:$0x1]
    %v194 = vld [vmem:[#allocation2 + $0x8] sm:$0xf]
    %v195 = vld [vmem:[#allocation2 + $0xc] sm:$0x1]
    %v196 = vld [vmem:[%s177 + $0x4] sm:$0x1]
    %v197 = vld [vmem:[%s177 + $0xc] sm:$0x1]
    %v202 = vunpack.c.l.b16 %v192
    %v203 = vunpack.c.l.b16 %v193
    %v204 = vunpack.c.l.b16 %v194
    %v205 = vunpack.c.l.b16 %v195
    %v206 = vpack.c.b16 %v203, %v202
    %v207 = vpack.c.b16 %v205, %v204
    %v209 = vshrl.u32 %v206, 16
    %v211 = vshll.u32 %v206, 16
    %v213 = vrot.slane %v211, 1
    %v214 = vor.u32 %v209, %v213
    %v216 = vshrl.u32 %v207, 16
    %v218 = vshll.u32 %v207, 16
    %v220 = vrot.slane %v218, 1
    %v221 = vor.u32 %v216, %v220
    %222 = vrot.lane.b32.xlu0 %v214, 64
    %v223 = vpop.permute.xlu0 %222
    %224 = vrot.lane.b32.xlu0 %v221, 64
    %v225 = vpop.permute.xlu0 %224
    %v230 = vunpack.c.l.b16 %v190
    %v231 = vunpack.c.l.b16 %v196
    %v232 = vunpack.c.l.b16 %v191
    %v233 = vunpack.c.l.b16 %v197
    %v234 = vpack.c.b16 %v231, %v230
    %v235 = vpack.c.b16 %v233, %v232
    %v237 = vshrl.u32 %v234, 16
    %v239 = vshll.u32 %v234, 16
    %v241 = vrot.slane %v239, 1
    %v242 = vor.u32 %v237, %v241
    %v244 = vshrl.u32 %v235, 16
    %v246 = vshll.u32 %v235, 16
    %v248 = vrot.slane %v246, 1
    %v249 = vor.u32 %v244, %v248
    %vm250 = vcmask 523264
    %v253 = vsel %vm250, %v190, %v223
    %v256 = vsel %vm250, %v191, %v225
    %v257 = vld [vmem:[#allocation2] sm:$0xe]
    %v258 = vld [vmem:[#allocation2 + $0x8] sm:$0xe]
    %259 = vrot.lane.b32.xlu0 %v234, 64
    %v260 = vpop.permute.xlu0 %259
    %261 = vrot.lane.b32.xlu0 %v235, 64
    %v262 = vpop.permute.xlu0 %261
    %v265 = vunpack.c.l.b16 %v257
    %v266 = vunpack.c.l.b16 %v258
    %v267 = vpack.c.b16 %v203, %v265
    %v268 = vpack.c.b16 %v205, %v266
    %v270 = vshrl.u32 %v267, 16
    %v272 = vshll.u32 %v267, 16
    %v274 = vrot.slane %v272, 1
    %v275 = vor.u32 %v270, %v274
    %v277 = vshrl.u32 %v268, 16
    %v279 = vshll.u32 %v268, 16
    %v281 = vrot.slane %v279, 1
    %v282 = vor.u32 %v277, %v281
    %v284 = vsel %vm250, %v206, %v260
    %v286 = vsel %vm250, %v207, %v262
    %v287 = vshrl.u32 %v284, 16
    %v289 = vshll.u32 %v284, 16
    %v291 = vrot.slane %v289, 1
    %v292 = vor.u32 %v287, %v291
    %v294 = vshrl.u32 %v275, 16
    %v296 = vshll.u32 %v275, 16
    %v298 = vrot.slane %v296, 1
    %v299 = vor.u32 %v294, %v298
    %v300 = vshrl.u32 %v286, 16
    %v302 = vshll.u32 %v286, 16
    %v304 = vrot.slane %v302, 1
    %v305 = vor.u32 %v300, %v304
    %v307 = vshrl.u32 %v282, 16
    %v309 = vshll.u32 %v282, 16
    %v311 = vrot.slane %v309, 1
    %v312 = vor.u32 %v307, %v311
    %v315 = vunpack.c.l.b16 %v253
    %v316 = vunpack.c.l.b16 %v242
    %v317 = vunpack.c.l.b16 %v256
    %v318 = vunpack.c.l.b16 %v249
    %v319 = vunpack.c.l.b16 %v292
    %v320 = vunpack.c.l.b16 %v299
    %v321 = vunpack.c.l.b16 %v305
    %v322 = vunpack.c.l.b16 %v312
    %v323 = vld [vmem:[%s2] sm:$0xf]
    %v324 = vld [vmem:[%s2 + $0x4] sm:$0xf]
    %v325 = vld [vmem:[%s2 + $0x8] sm:$0xf]
    %v326 = vld [vmem:[%s2 + $0xc] sm:$0xf]
    %v327 = vld [vmem:[%s2 + $0x10] sm:$0xf]
    %v328 = vld [vmem:[%s2 + $0x14] sm:$0xf]
    %v329 = vld [vmem:[%s2 + $0x18] sm:$0xf]
    %v330 = vld [vmem:[%s2 + $0x1c] sm:$0xf]
    %v331 = vld [vmem:[%s2 + $0x20] sm:$0xf]
    %v332 = vld [vmem:[%s2 + $0x24] sm:$0xf]
    %v333 = vld [vmem:[%s2 + $0x28] sm:$0xf]
    %v334 = vld [vmem:[%s2 + $0x2c] sm:$0xf]
    %v335 = vld [vmem:[%s2 + $0x30] sm:$0xf]
    %v336 = vld [vmem:[%s2 + $0x34] sm:$0xf]
    %v337 = vld [vmem:[%s2 + $0x38] sm:$0xf]
    %v338 = vld [vmem:[%s2 + $0x3c] sm:$0xf]
    %v339 = vld [vmem:[%s2 + $0x40] sm:$0xf]
    %v340 = vld [vmem:[%s2 + $0x44] sm:$0xf]
    %v341 = vld [vmem:[%s2 + $0x48] sm:$0xf]
    %v342 = vld [vmem:[%s2 + $0x4c] sm:$0xf]
    %v343 = vld [vmem:[%s2 + $0x50] sm:$0xf]
    %v344 = vld [vmem:[%s2 + $0x54] sm:$0xf]
    %v345 = vld [vmem:[%s2 + $0x58] sm:$0xf]
    %v346 = vld [vmem:[%s2 + $0x5c] sm:$0xf]
    %v347 = vld [vmem:[%s3] sm:$0x1]
    %v349 = vperm.slane %v347, 0
    %v351 = vpack.c.b16 %v317, %v315
    %v352 = vpack.c.b16 %v318, %v316
    %v353 = vpack.c.b16 %v321, %v319
    %v354 = vpack.c.b16 %v322, %v320
    %v381 = vunpack.c.l.b16 %v323
    %v382 = vunpack.c.l.b16 %v324
    %v383 = vunpack.c.l.b16 %v325
    %v384 = vunpack.c.l.b16 %v326
    %v385 = vunpack.c.l.b16 %v327
    %v386 = vunpack.c.l.b16 %v328
    %v387 = vunpack.c.l.b16 %v329
    %v388 = vunpack.c.l.b16 %v330
    %v389 = vunpack.c.l.b16 %v331
    %v390 = vunpack.c.l.b16 %v332
    %v391 = vunpack.c.l.b16 %v333
    %v392 = vunpack.c.l.b16 %v334
    %v393 = vunpack.c.l.b16 %v335
    %v394 = vunpack.c.l.b16 %v336
    %v395 = vunpack.c.l.b16 %v337
    %v396 = vunpack.c.l.b16 %v338
    %v397 = vunpack.c.l.b16 %v339
    %v398 = vunpack.c.l.b16 %v340
    %v399 = vunpack.c.l.b16 %v341
    %v400 = vunpack.c.l.b16 %v342
    %v401 = vunpack.c.l.b16 %v343
    %v402 = vunpack.c.l.b16 %v344
    %v403 = vunpack.c.l.b16 %v345
    %v404 = vunpack.c.l.b16 %v346
    %v405 = vpack.c.b16 %v382, %v381
    %v406 = vpack.c.b16 %v384, %v383
    %v407 = vpack.c.b16 %v386, %v385
    %v408 = vpack.c.b16 %v388, %v387
    %v409 = vpack.c.b16 %v390, %v389
    %v410 = vpack.c.b16 %v392, %v391
    %v411 = vpack.c.b16 %v394, %v393
    %v412 = vpack.c.b16 %v396, %v395
    %v413 = vpack.c.b16 %v398, %v397
    %v414 = vpack.c.b16 %v400, %v399
    %v415 = vpack.c.b16 %v402, %v401
    %v416 = vpack.c.b16 %v404, %v403
    %v430 = vsel %vm250, %v352, 0
    %v433 = vsel %vm250, %v354, 0
    %435 = vmatpush.bf16.msra.mxu0 %v412
    %436 = vmatpush.bf16.msra.mxu0 %v411
    %437 = vmatpush.bf16.msra.mxu0 %v410
    %438 = vmatpush.bf16.msra.mxu0 %v409
    %439 = vmatpush.bf16.msra.mxu0 %v408
    %440 = vmatpush.bf16.msra.mxu0 %v407
    %441 = vmatpush.bf16.msra.mxu0 %v406
    %442 = vmatpush.bf16.msra.mxu0 %v405
    %443 = vmatmul.bf16.gmra.mxu0 %v351
    %v444 = vpop.f32.mrf.mxu0
    %v445 = vadd.f32 %v349, %v444
    %v446 = vpop.f32.mrf.mxu0
    %v447 = vadd.f32 %v349, %v446
    %448 = vmatmul.bf16.gmra.mxu0 %v353
    %v449 = vpop.f32.mrf.mxu0
    %v450 = vadd.f32 %v349, %v449
    %v451 = vpop.f32.mrf.mxu0
    %v452 = vadd.f32 %v349, %v451
    %453 = vdwg.mxu0
    %454 = vmatpush.bf16.msra.mxu0 0
    %455 = vmatpush.bf16.msra.mxu0 0
    %456 = vmatpush.bf16.msra.mxu0 0
    %457 = vmatpush.bf16.msra.mxu0 0
    %458 = vmatpush.bf16.msra.mxu0 %v416
    %459 = vmatpush.bf16.msra.mxu0 %v415
    %460 = vmatpush.bf16.msra.mxu0 %v414
    %461 = vmatpush.bf16.msra.mxu0 %v413
    %462 = vmatmul.bf16.gmra.mxu0 %v430
    %v463 = vpop.f32.mrf.mxu0
    %v464 = vadd.f32 %v445, %v463
    %v465 = vpop.f32.mrf.mxu0
    %v466 = vadd.f32 %v447, %v465
    %467 = vmatmul.bf16.gmra.mxu0 %v433
    %v468 = vpop.f32.mrf.mxu0
    %v469 = vadd.f32 %v450, %v468
    %v470 = vpop.f32.mrf.mxu0
    %v471 = vadd.f32 %v452, %v470
    %472 = vdwg.mxu0
    %v473 = vmax.f32 %v464, 0.0
    %v474 = vmax.f32 %v466, 0.0
    %v475 = vmax.f32 %v469, 0.0
    %v476 = vmax.f32 %v471, 0.0
    %v477 = vpack.c.bf16 %v473, %v473
    %v478 = vpack.c.bf16 %v474, %v474
    %v479 = vpack.c.bf16 %v475, %v475
    %v480 = vpack.c.bf16 %v476, %v476
    %v482 = vshrl.u32 %v477, 16
    %v484 = vrot.slane %v482, 7
    %v485 = vshll.u32 %v477, 16
    %v487 = vor.u32 %v484, %v485
    %v488 = vrot.slane %v484, 4
    %v490 = vshrl.u32 %v478, 16
    %v492 = vrot.slane %v490, 7
    %v493 = vshll.u32 %v478, 16
    %v495 = vor.u32 %v492, %v493
    %v496 = vrot.slane %v492, 4
    %v498 = vshrl.u32 %v479, 16
    %v500 = vrot.slane %v498, 7
    %v501 = vshll.u32 %v479, 16
    %v503 = vor.u32 %v500, %v501
    %v504 = vrot.slane %v500, 4
    %v506 = vshrl.u32 %v480, 16
    %v508 = vrot.slane %v506, 7
    %v509 = vshll.u32 %v480, 16
    %v511 = vor.u32 %v508, %v509
    %v512 = vrot.slane %v508, 4
    %v521 = vld [vmem:[#allocation3] sm:$0xf]
    %v522 = vsel %vm144, %v487, %v521
    %523 = vst [vmem:[#allocation3] sm:$0xf] %v522
    %v524 = vld [vmem:[#allocation3 + $0x4] sm:$0x1]
    %v525 = vsel %vm27, %v488, %v524
    %526 = vst [vmem:[#allocation3 + $0x4] sm:$0x1] %v525
    %v527 = vld [vmem:[#allocation3 + $0x8] sm:$0xf]
    %v528 = vsel %vm144, %v495, %v527
    %529 = vst [vmem:[#allocation3 + $0x8] sm:$0xf] %v528
    %v530 = vld [vmem:[#allocation3 + $0xc] sm:$0x1]
    %v531 = vsel %vm27, %v496, %v530
    %532 = vst [vmem:[#allocation3 + $0xc] sm:$0x1] %v531
    %v533 = vld [vmem:[#allocation3 + $0x10] sm:$0xf]
    %v534 = vsel %vm144, %v503, %v533
    %535 = vst [vmem:[#allocation3 + $0x10] sm:$0xf] %v534
    %v536 = vld [vmem:[#allocation3 + $0x14] sm:$0x1]
    %v537 = vsel %vm27, %v504, %v536
    %538 = vst [vmem:[#allocation3 + $0x14] sm:$0x1] %v537
    %v539 = vld [vmem:[#allocation3 + $0x18] sm:$0xf]
    %v540 = vsel %vm144, %v511, %v539
    %541 = vst [vmem:[#allocation3 + $0x18] sm:$0xf] %v540
    %v542 = vld [vmem:[#allocation3 + $0x1c] sm:$0x1]
    %v543 = vsel %vm27, %v512, %v542
    %544 = vst [vmem:[#allocation3 + $0x1c] sm:$0x1] %v543
    %s545 = scalar_lea.vmem [#allocation3], 16
    %v546 = vld [vmem:[%s545] sm:$0xf]
    %v547 = vld [vmem:[%s545 + $0x8] sm:$0xf]
    %v548 = vld [vmem:[#allocation3] sm:$0xf]
    %v549 = vld [vmem:[#allocation3 + $0x4] sm:$0x1]
    %v550 = vld [vmem:[#allocation3 + $0x8] sm:$0xf]
    %v551 = vld [vmem:[#allocation3 + $0xc] sm:$0x1]
    %v552 = vld [vmem:[%s545 + $0x4] sm:$0x1]
    %v553 = vld [vmem:[%s545 + $0xc] sm:$0x1]
    %v558 = vunpack.c.l.b16 %v548
    %v559 = vunpack.c.l.b16 %v549
    %v560 = vunpack.c.l.b16 %v550
    %v561 = vunpack.c.l.b16 %v551
    %v562 = vpack.c.b16 %v559, %v558
    %v563 = vpack.c.b16 %v561, %v560
    %v565 = vshrl.u32 %v562, 16
    %v567 = vshll.u32 %v562, 16
    %v569 = vrot.slane %v567, 1
    %v570 = vor.u32 %v565, %v569
    %v572 = vshrl.u32 %v563, 16
    %v574 = vshll.u32 %v563, 16
    %v576 = vrot.slane %v574, 1
    %v577 = vor.u32 %v572, %v576
    %578 = vrot.lane.b32.xlu0 %v570, 64
    %v579 = vpop.permute.xlu0 %578
    %580 = vrot.lane.b32.xlu0 %v577, 64
    %v581 = vpop.permute.xlu0 %580
    %v586 = vunpack.c.l.b16 %v546
    %v587 = vunpack.c.l.b16 %v552
    %v588 = vunpack.c.l.b16 %v547
    %v589 = vunpack.c.l.b16 %v553
    %v590 = vpack.c.b16 %v587, %v586
    %v591 = vpack.c.b16 %v589, %v588
    %v593 = vshrl.u32 %v590, 16
    %v595 = vshll.u32 %v590, 16
    %v597 = vrot.slane %v595, 1
    %v598 = vor.u32 %v593, %v597
    %v600 = vshrl.u32 %v591, 16
    %v602 = vshll.u32 %v591, 16
    %v604 = vrot.slane %v602, 1
    %v605 = vor.u32 %v600, %v604
    %v608 = vsel %vm250, %v546, %v579
    %v611 = vsel %vm250, %v547, %v581
    %v612 = vld [vmem:[#allocation3] sm:$0xe]
    %v613 = vld [vmem:[#allocation3 + $0x8] sm:$0xe]
    %614 = vrot.lane.b32.xlu0 %v590, 64
    %v615 = vpop.permute.xlu0 %614
    %616 = vrot.lane.b32.xlu0 %v591, 64
    %v617 = vpop.permute.xlu0 %616
    %v620 = vunpack.c.l.b16 %v612
    %v621 = vunpack.c.l.b16 %v613
    %v622 = vpack.c.b16 %v559, %v620
    %v623 = vpack.c.b16 %v561, %v621
    %v625 = vshrl.u32 %v622, 16
    %v627 = vshll.u32 %v622, 16
    %v629 = vrot.slane %v627, 1
    %v630 = vor.u32 %v625, %v629
    %v632 = vshrl.u32 %v623, 16
    %v634 = vshll.u32 %v623, 16
    %v636 = vrot.slane %v634, 1
    %v637 = vor.u32 %v632, %v636
    %v639 = vsel %vm250, %v562, %v615
    %v641 = vsel %vm250, %v563, %v617
    %v642 = vshrl.u32 %v639, 16
    %v644 = vshll.u32 %v639, 16
    %v646 = vrot.slane %v644, 1
    %v647 = vor.u32 %v642, %v646
    %v649 = vshrl.u32 %v630, 16
    %v651 = vshll.u32 %v630, 16
    %v653 = vrot.slane %v651, 1
    %v654 = vor.u32 %v649, %v653
    %v655 = vshrl.u32 %v641, 16
    %v657 = vshll.u32 %v641, 16
    %v659 = vrot.slane %v657, 1
    %v660 = vor.u32 %v655, %v659
    %v662 = vshrl.u32 %v637, 16
    %v664 = vshll.u32 %v637, 16
    %v666 = vrot.slane %v664, 1
    %v667 = vor.u32 %v662, %v666
    %v670 = vunpack.c.l.b16 %v608
    %v671 = vunpack.c.l.b16 %v598
    %v672 = vunpack.c.l.b16 %v611
    %v673 = vunpack.c.l.b16 %v605
    %v674 = vunpack.c.l.b16 %v647
    %v675 = vunpack.c.l.b16 %v654
    %v676 = vunpack.c.l.b16 %v660
    %v677 = vunpack.c.l.b16 %v667
    %v678 = vld [vmem:[%s4] sm:$0xf]
    %v679 = vld [vmem:[%s4 + $0x4] sm:$0xf]
    %v680 = vld [vmem:[%s4 + $0x8] sm:$0xf]
    %v681 = vld [vmem:[%s4 + $0xc] sm:$0xf]
    %v682 = vld [vmem:[%s4 + $0x10] sm:$0xf]
    %v683 = vld [vmem:[%s4 + $0x14] sm:$0xf]
    %v684 = vld [vmem:[%s4 + $0x18] sm:$0xf]
    %v685 = vld [vmem:[%s4 + $0x1c] sm:$0xf]
    %v686 = vld [vmem:[%s4 + $0x20] sm:$0xf]
    %v687 = vld [vmem:[%s4 + $0x24] sm:$0xf]
    %v688 = vld [vmem:[%s4 + $0x28] sm:$0xf]
    %v689 = vld [vmem:[%s4 + $0x2c] sm:$0xf]
    %v690 = vld [vmem:[%s4 + $0x30] sm:$0xf]
    %v691 = vld [vmem:[%s4 + $0x34] sm:$0xf]
    %v692 = vld [vmem:[%s4 + $0x38] sm:$0xf]
    %v693 = vld [vmem:[%s4 + $0x3c] sm:$0xf]
    %v694 = vld [vmem:[%s4 + $0x40] sm:$0xf]
    %v695 = vld [vmem:[%s4 + $0x44] sm:$0xf]
    %v696 = vld [vmem:[%s4 + $0x48] sm:$0xf]
    %v697 = vld [vmem:[%s4 + $0x4c] sm:$0xf]
    %v698 = vld [vmem:[%s4 + $0x50] sm:$0xf]
    %v699 = vld [vmem:[%s4 + $0x54] sm:$0xf]
    %v700 = vld [vmem:[%s4 + $0x58] sm:$0xf]
    %v701 = vld [vmem:[%s4 + $0x5c] sm:$0xf]
    %v702 = vld [vmem:[%s5] sm:$0x1]
    %v704 = vperm.slane %v702, 0
    %v706 = vpack.c.b16 %v672, %v670
    %v707 = vpack.c.b16 %v673, %v671
    %v708 = vpack.c.b16 %v676, %v674
    %v709 = vpack.c.b16 %v677, %v675
    %v736 = vunpack.c.l.b16 %v678
    %v737 = vunpack.c.l.b16 %v679
    %v738 = vunpack.c.l.b16 %v680
    %v739 = vunpack.c.l.b16 %v681
    %v740 = vunpack.c.l.b16 %v682
    %v741 = vunpack.c.l.b16 %v683
    %v742 = vunpack.c.l.b16 %v684
    %v743 = vunpack.c.l.b16 %v685
    %v744 = vunpack.c.l.b16 %v686
    %v745 = vunpack.c.l.b16 %v687
    %v746 = vunpack.c.l.b16 %v688
    %v747 = vunpack.c.l.b16 %v689
    %v748 = vunpack.c.l.b16 %v690
    %v749 = vunpack.c.l.b16 %v691
    %v750 = vunpack.c.l.b16 %v692
    %v751 = vunpack.c.l.b16 %v693
    %v752 = vunpack.c.l.b16 %v694
    %v753 = vunpack.c.l.b16 %v695
    %v754 = vunpack.c.l.b16 %v696
    %v755 = vunpack.c.l.b16 %v697
    %v756 = vunpack.c.l.b16 %v698
    %v757 = vunpack.c.l.b16 %v699
    %v758 = vunpack.c.l.b16 %v700
    %v759 = vunpack.c.l.b16 %v701
    %v760 = vpack.c.b16 %v737, %v736
    %v761 = vpack.c.b16 %v739, %v738
    %v762 = vpack.c.b16 %v741, %v740
    %v763 = vpack.c.b16 %v743, %v742
    %v764 = vpack.c.b16 %v745, %v744
    %v765 = vpack.c.b16 %v747, %v746
    %v766 = vpack.c.b16 %v749, %v748
    %v767 = vpack.c.b16 %v751, %v750
    %v768 = vpack.c.b16 %v753, %v752
    %v769 = vpack.c.b16 %v755, %v754
    %v770 = vpack.c.b16 %v757, %v756
    %v771 = vpack.c.b16 %v759, %v758
    %v785 = vsel %vm250, %v707, 0
    %v788 = vsel %vm250, %v709, 0
    %790 = vmatpush.bf16.msra.mxu0 %v767
    %791 = vmatpush.bf16.msra.mxu0 %v766
    %792 = vmatpush.bf16.msra.mxu0 %v765
    %793 = vmatpush.bf16.msra.mxu0 %v764
    %794 = vmatpush.bf16.msra.mxu0 %v763
    %795 = vmatpush.bf16.msra.mxu0 %v762
    %796 = vmatpush.bf16.msra.mxu0 %v761
    %797 = vmatpush.bf16.msra.mxu0 %v760
    %798 = vmatmul.bf16.gmra.mxu0 %v706
    %v799 = vpop.f32.mrf.mxu0
    %v800 = vadd.f32 %v704, %v799
    %v801 = vpop.f32.mrf.mxu0
    %v802 = vadd.f32 %v704, %v801
    %803 = vmatmul.bf16.gmra.mxu0 %v708
    %v804 = vpop.f32.mrf.mxu0
    %v805 = vadd.f32 %v704, %v804
    %v806 = vpop.f32.mrf.mxu0
    %v807 = vadd.f32 %v704, %v806
    %808 = vdwg.mxu0
    %809 = vmatpush.bf16.msra.mxu0 0
    %810 = vmatpush.bf16.msra.mxu0 0
    %811 = vmatpush.bf16.msra.mxu0 0
    %812 = vmatpush.bf16.msra.mxu0 0
    %813 = vmatpush.bf16.msra.mxu0 %v771
    %814 = vmatpush.bf16.msra.mxu0 %v770
    %815 = vmatpush.bf16.msra.mxu0 %v769
    %816 = vmatpush.bf16.msra.mxu0 %v768
    %817 = vmatmul.bf16.gmra.mxu0 %v785
    %v818 = vpop.f32.mrf.mxu0
    %v819 = vadd.f32 %v800, %v818
    %v820 = vpop.f32.mrf.mxu0
    %v821 = vadd.f32 %v802, %v820
    %822 = vmatmul.bf16.gmra.mxu0 %v788
    %v823 = vpop.f32.mrf.mxu0
    %v824 = vadd.f32 %v805, %v823
    %v825 = vpop.f32.mrf.mxu0
    %v826 = vadd.f32 %v807, %v825
    %827 = vdwg.mxu0
    %v828 = vmax.f32 %v819, 0.0
    %v829 = vmax.f32 %v821, 0.0
    %v830 = vmax.f32 %v824, 0.0
    %v831 = vmax.f32 %v826, 0.0
    %832 = vst [vmem:[#allocation4] sm:$0xff] %v828
    %833 = vst [vmem:[#allocation4 + $0x8] sm:$0xff] %v829
    %834 = vst [vmem:[#allocation4 + $0x10] sm:$0xff] %v830
    %835 = vst [vmem:[#allocation4 + $0x18] sm:$0xff] %v831
    // Predicated region
    $region26: #{tpu_custom_call.1} parent=1 // pred_check
      _
    $region27: #{tpu_custom_call.1} parent=1 // pred_check_branch
      %837 = sbr.rel (0) target = $region29
    $region28: #{tpu_custom_call.1} parent=1 // pred_region
      %839 = vsyncadd [#allocation5], 0
      %s840 = sshll.u32 [#allocation4], 4
      %s841 = int_to_ptr.vmem [resolvable:$true] %s840
      %s842 = sshll.u32 %s6, 4
      %s843 = int_to_ptr.hbm [resolvable:$true] %s842
      %848 = dma.vmem_to_hbm [thread:$0]  %s841, 512, %s843, [#allocation5], 128, 128, 8
    $region29: #{tpu_custom_call.1} parent=1 // pred_fallthru
      _
    // Predicated region
    $region30: #{tpu_custom_call.1} parent=1 // pred_check
      _
    $region31: #{tpu_custom_call.1} parent=1 // pred_check_branch
      %850 = sbr.rel (0) target = $region33
    $region32: #{tpu_custom_call.1} parent=1 // pred_region
      %852 = dma.done [#allocation5], 512
    $region33: #{tpu_custom_call.1} parent=1 // pred_fallthru
      _
    %853 = vsyncpa [#allocation5], 1

</llo_original>
